<compile_context>
chip_gen: v6e
topology: v6e:2x2x1
jax: 0.10.0
libtpu: 0.0.40
codegen_flags: <defaults>
</compile_context>

<pallas_src>
import numpy as np
import jax
import jax.numpy as jnp
from jax.experimental import pallas as pl
from jax.experimental.pallas import tpu as pltpu

N_QUBITS = 4
N_LAYERS = 2
DIM = 2 ** N_QUBITS
LANE = 128
TILE_B_MAX = 8192              # lanes of batch per grid step (review: 4096-8192)
assert TILE_B_MAX % LANE == 0


# ----------------------------------------------------------------------------
# Module-level numpy constant tables (built once at import; wire 0 is the
# most-significant bit of the basis-state index, PennyLane default.qubit order).
# ----------------------------------------------------------------------------
def _np_constant_tables(n_qubits=N_QUBITS):
    dim = 2 ** n_qubits
    s_idx = np.arange(dim)
    bits = np.zeros((n_qubits, dim), np.float32)
    for w in range(n_qubits):
        bits[w] = (s_idx >> (n_qubits - 1 - w)) & 1
    popcount = bits.sum(0).astype(np.int64) % 4
    # (-i)^popcount phase of the RX product state
    phase_re = np.where(popcount == 0, 1.0, np.where(popcount == 2, -1.0, 0.0)).astype(np.float32)
    phase_im = np.where(popcount == 1, -1.0, np.where(popcount == 3, 1.0, 0.0)).astype(np.float32)
    z01 = (1.0 - bits).astype(np.float32)            # (nq, dim): (zsign+1)/2 folded readout
    z01_2 = np.concatenate([z01, z01], axis=1)       # (nq, 2*dim): applied to [fr; fi]^2
    zsign = (1.0 - 2.0 * bits.T).astype(np.float32)  # (dim, nq) for the numpy reference
    return z01_2, phase_re, phase_im, zsign


_Z01_2_NP, _PHASE_RE_NP, _PHASE_IM_NP, _ZSIGN_NP = _np_constant_tables()


# ----------------------------------------------------------------------------
# Glue: real 16x16 unitary for the CNOT/RY part of the circuit (runs under jit,
# traced once per weights shape; tiny).
# ----------------------------------------------------------------------------
def _embed_1q(gate, wire, n_qubits):
    m = jnp.eye(1, dtype=jnp.float32)
    for w in range(n_qubits):
        m = jnp.kron(m, gate if w == wire else jnp.eye(2, dtype=jnp.float32))
    return m


def build_post_rx_unitary(weights, n_qubits=N_QUBITS, n_layers=N_LAYERS):
    X = jnp.array([[0.0, 1.0], [1.0, 0.0]], jnp.float32)
    P0 = jnp.array([[1.0, 0.0], [0.0, 0.0]], jnp.float32)
    P1 = jnp.array([[0.0, 0.0], [0.0, 1.0]], jnp.float32)
    U = jnp.eye(2 ** n_qubits, dtype=jnp.float32)
    for layer in range(n_layers):
        for wire in range(n_qubits):
            c, t = wire, (wire + 1) % n_qubits
            cnot = _embed_1q(P0, c, n_qubits) + _embed_1q(P1, c, n_qubits) @ _embed_1q(X, t, n_qubits)
            U = cnot @ U
        for wire in range(n_qubits):
            th = weights[layer, wire]
            ry = jnp.array([[jnp.cos(th / 2), -jnp.sin(th / 2)],
                            [jnp.sin(th / 2), jnp.cos(th / 2)]], jnp.float32)
            U = _embed_1q(ry, wire, n_qubits) @ U
    return U  # real-valued (CNOT and RY are real)


# ----------------------------------------------------------------------------
# Pallas kernel: Kronecker-ladder statevector build + one fused MXU matmul with
# the precomputed [U*phase_re ; U*phase_im] matrix + folded PauliZ readout.
# ----------------------------------------------------------------------------
def qcircuit_kernel(noise_ref, w_ref, z01_ref, out_ref):
    noise = noise_ref[...]                                 # (nq, TB) f32, batch on lanes
    c = jnp.cos(noise * 0.5)                               # (nq, TB)  (EUP)
    s = jnp.sin(noise * 0.5)

    nq = noise.shape[0]
    half_dim = 1 << (nq - 1)

    # --- Kronecker-doubling ladder ------------------------------------------------------
    # amp[st, b] = prod_w (cos if bit_w(st)==0 else sin), wire 0 = MSB of the state index.
    # Wires 1..nq-1 are combined on a (half_dim, TB) block: one VPU select per wire against
    # a static sublane bit mask (the (1,TB) cos/sin rows are sublane-broadcast on the XLU).
    row = jax.lax.broadcasted_iota(jnp.int32, (half_dim, 1), 0)   # j = b1*4 + b2*2 + b3
    m = jnp.where((row & (half_dim >> 1)) != 0, s[1:2, :], c[1:2, :])
    for w in range(2, nq):
        m = m * jnp.where((row & (half_dim >> w)) != 0, s[w:w + 1, :], c[w:w + 1, :])
    # Wire 0 (MSB): single aligned 8+8 -> 16 sublane concatenation.
    mag = jnp.concatenate([c[0:1, :] * m, s[0:1, :] * m], axis=0)  # (dim, TB)

    # --- one MXU matmul with [U*phase_re ; U*phase_im] -----------------------------------
    fri = jnp.dot(w_ref[...], mag,
                  precision=jax.lax.Precision.HIGHEST,
                  preferred_element_type=jnp.float32)              # (2*dim, TB)
    sq = fri * fri                                                 # (2*dim, TB)

    # out = z01 @ (fr^2 + fi^2): the re/im add is folded into this MXU contraction and the
    # (expz + 1)/2 rescale into the 0/1 readout matrix (probabilities sum to 1).
    out_ref[...] = jnp.dot(z01_ref[...], sq,
                           precision=jax.lax.Precision.HIGHEST,
                           preferred_element_type=jnp.float32)     # (nq, TB)


# ----------------------------------------------------------------------------
# Tiling plan: large lane tiles, grid >= 2 when possible (v7x megacore).
# ----------------------------------------------------------------------------
def _ceil_div(a, b):
    return -(-a // b)


def _round_up(a, m):
    return _ceil_div(a, m) * m


def _tile_plan(batch):
    pad_b = max(LANE, _round_up(batch, LANE))
    if pad_b == LANE:                       # a single 128-lane column block cannot be split
        return LANE, LANE, 1
    grid_b = max(2, _ceil_div(pad_b, TILE_B_MAX))          # >= 2 steps -> both v7x TCs busy
    tile_b = _round_up(_ceil_div(pad_b, grid_b), LANE)
    pad_b = tile_b * grid_b
    assert tile_b % LANE == 0 and tile_b <= TILE_B_MAX     # lane alignment (review note)
    return pad_b, tile_b, grid_b


# ----------------------------------------------------------------------------
# Layout-native entry point: (n_qubits, batch) -> (n_qubits, batch), no transposes.
# ----------------------------------------------------------------------------
@jax.jit
def generator_quantum_circuit_forward_t(noise_t, weights):
    noise_t = noise_t.astype(jnp.float32)
    nq, batch = noise_t.shape
    assert nq == N_QUBITS
    dim = 2 ** nq

    pad_b, tile_b, grid_b = _tile_plan(batch)
    noise_p = noise_t if pad_b == batch else jnp.pad(noise_t, ((0, 0), (0, pad_b - batch)))

    # precompute: fold the (-i)^popcount phase diagonal into U, stack re/im halves.
    U = build_post_rx_unitary(weights, nq, N_LAYERS)                        # (dim, dim), real
    W = jnp.concatenate([U * jnp.asarray(_PHASE_RE_NP)[None, :],
                         U * jnp.asarray(_PHASE_IM_NP)[None, :]], axis=0)   # (2*dim, dim)
    z01_2 = jnp.asarray(_Z01_2_NP)                                          # (nq, 2*dim)

    out = pl.pallas_call(
        qcircuit_kernel,
        out_shape=jax.ShapeDtypeStruct((nq, pad_b), jnp.float32),
        grid=(grid_b,),
        in_specs=[
            pl.BlockSpec((nq, tile_b), lambda i: (0, i)),       # noise: batch tile on lanes
            pl.BlockSpec((2 * dim, dim), lambda i: (0, 0)),     # [U*phase_re ; U*phase_im]
            pl.BlockSpec((nq, 2 * dim), lambda i: (0, 0)),      # folded Z readout (512 B)
        ],
        out_specs=pl.BlockSpec((nq, tile_b), lambda i: (0, i)),
        compiler_params=pltpu.CompilerParams(
            dimension_semantics=("parallel",),          # shards batch tiles over v7x's 2 TCs
            vmem_limit_bytes=32 * 1024 * 1024,          # v5e default is only 16 MiB scoped
        ),
    )(noise_p, W, z01_2)

    return out[:, :batch]


# ----------------------------------------------------------------------------
# Module-contract wrapper: (batch, n_qubits) -> (batch, n_qubits).
# NOTE(perf review): the two boundary transposes below re-read/write the same (tiny) data
# the kernel touches; callers that can keep a wires-major (n_qubits, batch) layout should
# call generator_quantum_circuit_forward_t directly and skip them.
# ----------------------------------------------------------------------------
@jax.jit
def generator_quantum_circuit_forward(noise, weights):
    return generator_quantum_circuit_forward_t(noise.astype(jnp.float32).T, weights).T


# ----------------------------------------------------------------------------
# Pure numpy reference (independent statevector simulation).
# ----------------------------------------------------------------------------
def reference_forward(noise, weights):
    U = np.asarray(build_post_rx_unitary(jnp.asarray(weights))).astype(np.complex128)
    outs = []
    for n in np.asarray(noise):
        state = np.zeros(DIM, np.complex128)
        state[0] = 1.0
        for w in range(N_QUBITS):
            th = float(n[w])
            rx = np.array([[np.cos(th / 2), -1j * np.sin(th / 2)],
                           [-1j * np.sin(th / 2), np.cos(th / 2)]])
            full = np.eye(1)
            for q in range(N_QUBITS):
                full = np.kron(full, rx if q == w else np.eye(2))
            state = full @ state
        state = U @ state
        probs = np.abs(state) ** 2
        expz = probs @ _ZSIGN_NP
        outs.append((expz + 1.0) / 2.0)
    return np.stack(outs).astype(np.float32)


if __name__ == "__main__":
    key = jax.random.PRNGKey(0)
    k_w, k_n = jax.random.split(key)
    weights = jax.random.normal(k_w, (N_LAYERS, N_QUBITS), dtype=jnp.float32)  # ~ torch.randn
    noise = jax.random.normal(k_n, (8, N_QUBITS), dtype=jnp.float32)           # batch = 8

    out = jax.block_until_ready(generator_quantum_circuit_forward(noise, weights))

    ref = reference_forward(noise, weights)
    np.testing.assert_allclose(np.asarray(out), ref, rtol=1e-3, atol=1e-4)
    print("KERNEL_OK")
</pallas_src>

<mosaic_0001>
module attributes {stable_mosaic.version = 11 : i64} {
  func.func @qcircuit_kernel(%arg0: i32, %arg1: memref<4x128xf32, #tpu.memory_space<vmem>>, %arg2: memref<32x16xf32, #tpu.memory_space<vmem>>, %arg3: memref<4x32xf32, #tpu.memory_space<vmem>>, %arg4: memref<4x128xf32, #tpu.memory_space<vmem>>) attributes {dimension_semantics = [#tpu.dimension_semantics<parallel>], iteration_bounds = array<i64: 1>, scalar_prefetch = 0 : i64, scratch_operands = 0 : i64, tpu.core_type = #tpu.core_type<tc>, window_params = [{transform_indices = @transform_0, window_bounds = array<i64: 4, 128>}, {pipeline_mode = #tpu.pipeline_mode<synchronous>, transform_indices = @transform_1, window_bounds = array<i64: 32, 16>}, {pipeline_mode = #tpu.pipeline_mode<synchronous>, transform_indices = @transform_2, window_bounds = array<i64: 4, 32>}, {transform_indices = @transform_3, window_bounds = array<i64: 4, 128>}]} {
    %c0 = arith.constant 0 : index
    %c0_0 = arith.constant 0 : index
    %0 = vector.load %arg1[%c0, %c0_0] : memref<4x128xf32, #tpu.memory_space<vmem>>, vector<4x128xf32>
    %cst = arith.constant 5.000000e-01 : f32
    %1 = vector.broadcast %cst : f32 to vector<4x128xf32>
    %2 = arith.mulf %0, %1 : vector<4x128xf32>
    %3 = math.cos %2 : vector<4x128xf32>
    %cst_1 = arith.constant 5.000000e-01 : f32
    %4 = vector.broadcast %cst_1 : f32 to vector<4x128xf32>
    %5 = arith.mulf %0, %4 : vector<4x128xf32>
    %6 = math.sin %5 : vector<4x128xf32>
    %7 = tpu.iota {dimensions = array<i32: 0>} : vector<8x1xi32>
    %c4_i32 = arith.constant 4 : i32
    %8 = vector.broadcast %c4_i32 : i32 to vector<8x1xi32>
    %9 = arith.andi %7, %8 : vector<8x1xi32>
    %c0_i32 = arith.constant 0 : i32
    %10 = vector.broadcast %c0_i32 : i32 to vector<8x1xi32>
    %11 = arith.cmpi ne, %9, %10 : vector<8x1xi32>
    %12 = vector.extract_strided_slice %6 {offsets = [1, 0], sizes = [1, 128], strides = [1, 1]} : vector<4x128xf32> to vector<1x128xf32>
    %13 = vector.extract_strided_slice %3 {offsets = [1, 0], sizes = [1, 128], strides = [1, 1]} : vector<4x128xf32> to vector<1x128xf32>
    %14 = vector.shape_cast %11 : vector<8x1xi1> to vector<8x1xi1>
    %15 = vector.broadcast %14 : vector<8x1xi1> to vector<8x128xi1>
    %16 = vector.shape_cast %12 : vector<1x128xf32> to vector<1x128xf32>
    %17 = vector.broadcast %16 : vector<1x128xf32> to vector<8x128xf32>
    %18 = vector.shape_cast %13 : vector<1x128xf32> to vector<1x128xf32>
    %19 = vector.broadcast %18 : vector<1x128xf32> to vector<8x128xf32>
    %20 = arith.select %15, %17, %19 : vector<8x128xi1>, vector<8x128xf32>
    %c2_i32 = arith.constant 2 : i32
    %21 = vector.broadcast %c2_i32 : i32 to vector<8x1xi32>
    %22 = arith.andi %7, %21 : vector<8x1xi32>
    %c0_i32_2 = arith.constant 0 : i32
    %23 = vector.broadcast %c0_i32_2 : i32 to vector<8x1xi32>
    %24 = arith.cmpi ne, %22, %23 : vector<8x1xi32>
    %25 = vector.extract_strided_slice %6 {offsets = [2, 0], sizes = [1, 128], strides = [1, 1]} : vector<4x128xf32> to vector<1x128xf32>
    %26 = vector.extract_strided_slice %3 {offsets = [2, 0], sizes = [1, 128], strides = [1, 1]} : vector<4x128xf32> to vector<1x128xf32>
    %27 = vector.shape_cast %24 : vector<8x1xi1> to vector<8x1xi1>
    %28 = vector.broadcast %27 : vector<8x1xi1> to vector<8x128xi1>
    %29 = vector.shape_cast %25 : vector<1x128xf32> to vector<1x128xf32>
    %30 = vector.broadcast %29 : vector<1x128xf32> to vector<8x128xf32>
    %31 = vector.shape_cast %26 : vector<1x128xf32> to vector<1x128xf32>
    %32 = vector.broadcast %31 : vector<1x128xf32> to vector<8x128xf32>
    %33 = arith.select %28, %30, %32 : vector<8x128xi1>, vector<8x128xf32>
    %34 = arith.mulf %20, %33 : vector<8x128xf32>
    %c1_i32 = arith.constant 1 : i32
    %35 = vector.broadcast %c1_i32 : i32 to vector<8x1xi32>
    %36 = arith.andi %7, %35 : vector<8x1xi32>
    %c0_i32_3 = arith.constant 0 : i32
    %37 = vector.broadcast %c0_i32_3 : i32 to vector<8x1xi32>
    %38 = arith.cmpi ne, %36, %37 : vector<8x1xi32>
    %39 = vector.extract_strided_slice %6 {offsets = [3, 0], sizes = [1, 128], strides = [1, 1]} : vector<4x128xf32> to vector<1x128xf32>
    %40 = vector.extract_strided_slice %3 {offsets = [3, 0], sizes = [1, 128], strides = [1, 1]} : vector<4x128xf32> to vector<1x128xf32>
    %41 = vector.shape_cast %38 : vector<8x1xi1> to vector<8x1xi1>
    %42 = vector.broadcast %41 : vector<8x1xi1> to vector<8x128xi1>
    %43 = vector.shape_cast %39 : vector<1x128xf32> to vector<1x128xf32>
    %44 = vector.broadcast %43 : vector<1x128xf32> to vector<8x128xf32>
    %45 = vector.shape_cast %40 : vector<1x128xf32> to vector<1x128xf32>
    %46 = vector.broadcast %45 : vector<1x128xf32> to vector<8x128xf32>
    %47 = arith.select %42, %44, %46 : vector<8x128xi1>, vector<8x128xf32>
    %48 = arith.mulf %34, %47 : vector<8x128xf32>
    %49 = vector.extract_strided_slice %3 {offsets = [0, 0], sizes = [1, 128], strides = [1, 1]} : vector<4x128xf32> to vector<1x128xf32>
    %50 = vector.broadcast %49 : vector<1x128xf32> to vector<8x128xf32>
    %51 = arith.mulf %50, %48 : vector<8x128xf32>
    %52 = vector.extract_strided_slice %6 {offsets = [0, 0], sizes = [1, 128], strides = [1, 1]} : vector<4x128xf32> to vector<1x128xf32>
    %53 = vector.broadcast %52 : vector<1x128xf32> to vector<8x128xf32>
    %54 = arith.mulf %53, %48 : vector<8x128xf32>
    %55 = tpu.concatenate %51, %54 in 0 : vector<8x128xf32>, vector<8x128xf32> -> vector<16x128xf32>
    %c0_4 = arith.constant 0 : index
    %c0_5 = arith.constant 0 : index
    %56 = vector.load %arg2[%c0_4, %c0_5] : memref<32x16xf32, #tpu.memory_space<vmem>>, vector<32x16xf32>
    %cst_6 = arith.constant dense<0.000000e+00> : vector<32x128xf32>
    %57 = tpu.matmul %56, %55, %cst_6 {dimension_numbers = #tpu.dot_dimension_numbers<[1], [0], [0], [1], [0, 0, 1, 1], [], []>, precision = #tpu.contract_precision<fp32>} : vector<32x16xf32>, vector<16x128xf32>, vector<32x128xf32> -> vector<32x128xf32>
    %58 = arith.mulf %57, %57 : vector<32x128xf32>
    %c0_7 = arith.constant 0 : index
    %c0_8 = arith.constant 0 : index
    %59 = vector.load %arg3[%c0_7, %c0_8] : memref<4x32xf32, #tpu.memory_space<vmem>>, vector<4x32xf32>
    %cst_9 = arith.constant dense<0.000000e+00> : vector<4x128xf32>
    %60 = tpu.matmul %59, %58, %cst_9 {dimension_numbers = #tpu.dot_dimension_numbers<[1], [0], [0], [1], [0, 0, 1, 1], [], []>, precision = #tpu.contract_precision<fp32>} : vector<4x32xf32>, vector<32x128xf32>, vector<4x128xf32> -> vector<4x128xf32>
    %c0_10 = arith.constant 0 : index
    %c0_11 = arith.constant 0 : index
    %61 = vector.load %arg4[%c0_10, %c0_11] : memref<4x128xf32, #tpu.memory_space<vmem>>, vector<4x128xf32>
    tpu.vector_store %arg4[%c0_10, %c0_11], %60 {strides = array<i32>} : memref<4x128xf32, #tpu.memory_space<vmem>>, vector<4x128xf32>,
    return
  }
  func.func @transform_0(%arg0: i32) -> (i32, i32) {
    %c0_i32 = arith.constant 0 : i32
    %c0_i32_0 = arith.constant 0 : i32
    return %c0_i32, %arg0 : i32, i32
  }
  func.func @transform_1(%arg0: i32) -> (i32, i32) {
    %c0_i32 = arith.constant 0 : i32
    %c0_i32_0 = arith.constant 0 : i32
    %c0_i32_1 = arith.constant 0 : i32
    return %c0_i32, %c0_i32_0 : i32, i32
  }
  func.func @transform_2(%arg0: i32) -> (i32, i32) {
    %c0_i32 = arith.constant 0 : i32
    %c0_i32_0 = arith.constant 0 : i32
    %c0_i32_1 = arith.constant 0 : i32
    return %c0_i32, %c0_i32_0 : i32, i32
  }
  func.func @transform_3(%arg0: i32) -> (i32, i32) {
    %c0_i32 = arith.constant 0 : i32
    %c0_i32_0 = arith.constant 0 : i32
    return %c0_i32, %arg0 : i32, i32
  }
}

</mosaic_0001>

<llo_original>
// kernel: generator_quantum_circuit_forward_t.1
$region0: #{generator_quantum_circuit_forward_t.1}
  #allocation0 [shape = 'u32[]', space=smem, size = 0x4, offset = 0x4, fixed_abs, tag = 'smem constant byte address 0x4 - core index']
  #allocation1 [shape = 'u32[144,128]{1,0:T(1,128)}', space=vmem, size = 0x12000, scoped, tag = 'internal scratch']
  %s0 = inlined_call_operand.vmem [shape: f32[4,128], index: 0, kind: input, shape index: {}]
  %s1 = inlined_call_operand.vmem [shape: f32[32,16], index: 1, kind: input, shape index: {}]
  %s2 = inlined_call_operand.vmem [shape: f32[4,32], index: 2, kind: input, shape index: {}]
  %s3 = inlined_call_operand.hbm [shape: f32[4,128], index: 3, kind: output, shape index: {}]
  %s4 = sld [smem:[#allocation0]]
  $region22: #{generator_quantum_circuit_forward_t.1} parent=0
    _
  %s6 = ssub.s32 1, %s4
  %s7 = scalar_select 0, %s6, %s4
  $region1: #{generator_quantum_circuit_forward_t.1} parent=0
    #allocation2 [shape = 'u8[2048]{0}', space=vmem, size = 0x800, scoped, tag = 'output window, operand 0, single buffered']
    #allocation3 [shape = 's32[1]{0}', space=sflag, size = 0x4, scoped, tag = 'scoped memory for generator_quantum_circuit_forward_t.1']
    %8 = vsyncpa [#allocation3], 0
    // Predicated region
    $region2: #{generator_quantum_circuit_forward_t.1} parent=1 // pred_check
      _
    $region3: #{generator_quantum_circuit_forward_t.1} parent=1 // pred_check_branch
      %10 = sbr.rel (0) target = $region5
    $region4: #{generator_quantum_circuit_forward_t.1} parent=1 // pred_region
      _
    $region5: #{generator_quantum_circuit_forward_t.1} parent=1 // pred_fallthru
      _
    // Predicated region
    $region6: #{generator_quantum_circuit_forward_t.1} parent=1 // pred_check
      _
    $region7: #{generator_quantum_circuit_forward_t.1} parent=1 // pred_check_branch
      %12 = sbr.rel (0) target = $region9
    $region8: #{generator_quantum_circuit_forward_t.1} parent=1 // pred_region
      _
    $region9: #{generator_quantum_circuit_forward_t.1} parent=1 // pred_fallthru
      _
    // Predicated region
    $region10: #{generator_quantum_circuit_forward_t.1} parent=1 // pred_check
      _
    $region11: #{generator_quantum_circuit_forward_t.1} parent=1 // pred_check_branch
      %14 = sbr.rel (0) target = $region13
    $region12: #{generator_quantum_circuit_forward_t.1} parent=1 // pred_region
      _
    $region13: #{generator_quantum_circuit_forward_t.1} parent=1 // pred_fallthru
      _
    %v15 = vld [vmem:[%s0] sm:$0xf]
    %v16 = vmul.f32 %v15, 0.5
    %v17 = vand.u32 2147483647, %v16
    %vm18 = vcmp.le.f32.partialorder %v17, 0.7853982
    %vm19 = vcmp.lt.s32.totalorder %v16, 0
    %v20 = vand.u32 %v16, 2139095040
    %v21 = vshrl.u32 %v20, 23
    %v22 = vsub.s32 %v21, 127
    %v23 = vand.u32 2147483647, %v16
    %v24 = vand.u32 %v23, 8388607
    %v25 = vor.u32 %v24, 8388608
    %v26 = vsub.s32 0, %v25
    %v27 = vadd.s32 %v22, 1
    %vm28 = vcmp.gt.s32.totalorder %v27, 0
    %v29 = vsel %vm28, %v27, 0
    %v30 = vshrl.u32 %v29, 5
    %v31 = vand.u32 %v29, 31
    %v32 = vsub.s32 32, %v31
    %v33 = vshrl.u32 683565275, %v32
    %v34 = vshll.u32 683565275, %v31
    %v35 = vshrl.u32 2475754826, %v32
    %v36 = vor.u32 %v34, %v35
    %v37 = vshll.u32 2475754826, %v31
    %v38 = vshrl.u32 2131351028, %v32
    %v39 = vor.u32 %v37, %v38
    %v40 = vshll.u32 2131351028, %v31
    %v41 = vshrl.u32 2102212464, %v32
    %v42 = vor.u32 %v40, %v41
    %v43 = vshll.u32 2102212464, %v31
    %v44 = vshrl.u32 920167782, %v32
    %v45 = vor.u32 %v43, %v44
    %v46 = vshll.u32 920167782, %v31
    %v47 = vshrl.u32 1326507024, %v32
    %v48 = vor.u32 %v46, %v47
    %vm49 = vcmp.lt.s32.totalorder %v30, 1
    %vm50 = vcmp.lt.s32.totalorder %v30, 2
    %vm51 = vcmp.lt.s32.totalorder %v30, 3
    %vm52 = vcmp.lt.s32.totalorder %v30, 4
    %v53 = vsel %vm49, %v33, %v36
    %v54 = vsel %vm52, %v42, 2102212464
    %v55 = vsel %vm51, %v39, %v54
    %v56 = vsel %vm50, %v53, %v55
    %v57 = vsel %vm49, %v36, %v39
    %v58 = vsel %vm52, %v45, 920167782
    %v59 = vsel %vm51, %v42, %v58
    %v60 = vsel %vm50, %v57, %v59
    %v61 = vsel %vm49, %v39, %v42
    %v62 = vsel %vm52, %v48, 1326507024
    %v63 = vsel %vm51, %v45, %v62
    %v64 = vsel %vm50, %v61, %v63
    %v65 = vshll.u32 %v25, 8
    %v66 = vmul.u32.u64.compose %v65, %v64
    %v67 = vextract.low.u32 %v66
    %v68 = vextract.high.u32 %v66
    %v69 = vmul.u32.u64.compose %v65, %v60
    %v70 = vextract.low.u32 %v69
    %v71 = vextract.high.u32 %v69
    %v72 = vmul.u32 %v65, %v56
    %v73 = vadd.s32 %v68, %v70
    %vm74 = vc.u32 %v68, %v70
    %v75 = vadd.s32 %v71, 1
    %v76 = vsel %vm74, %v75, %v71
    %v77 = vadd.s32 %v72, %v76
    %v78 = vadd.s32 %v77, 536870912
    %v79 = vshrl.u32 %v78, 30
    %v80 = vshll.u32 %v79, 30
    %v81 = vsub.s32 %v77, %v80
    %vm82 = vcmp.lt.s32.totalorder %v81, 0
    %v83 = vsub.s32 0, %v81
    %v84 = vsel %vm82, %v83, %v81
    %v85 = vclz %v84
    %v86 = vsub.s32 %v85, 2
    %vm87 = vcmp.gt.s32.totalorder 0, %v86
    %v88 = vsel %vm87, 0, %v86
    %v89 = vsub.s32 32, %v88
    %v90 = vshll.u32 %v81, %v88
    %v91 = vshrl.u32 %v73, %v89
    %v92 = vor.u32 %v90, %v91
    %v93 = vsub.s32 4294967266, %v88
    %v94 = vadd.s32 %v93, 127
    %v95 = vshll.u32 %v94, 23
    %v96 = vor.u32 4788187, %v95
    %v97 = vand.u32 2147483647, %v96
    %v99 = vcvt.s32.f32 %v92
    %v100 = vmul.f32 %v99, %v97
    %v101 = vxor.u32 %v100, 2147483648
    %v102 = vsel %vm19, %v101, %v100
    %v103 = vsub.s32 4, %v79
    %v104 = vsel %vm19, %v103, %v79
    %v105 = vsel %vm18, %v16, %v102
    %v106 = vsel %vm18, 0, %v104
    %v107 = vcosq.f32.pop %v105
    %v108 = vsinq.f32.pop %v105
    %vm109 = vweird.f32 %v16
    %v110 = vand.u32 %v106, 3
    %vm111 = vcmp.lt.s32.totalorder %v110, 2
    %vm112 = vcmp.eq.s32.totalorder %v110, 0
    %v113 = vxor.u32 %v108, 2147483648
    %v114 = vsel %vm112, %v107, %v113
    %vm115 = vcmp.eq.s32.totalorder %v110, 2
    %v116 = vxor.u32 %v107, 2147483648
    %v117 = vsel %vm115, %v116, %v108
    %v118 = vsel %vm111, %v114, %v117
    %v119 = vsel %vm109, nan, %v118
    %v120 = vand.u32 2147483647, %v16
    %vm121 = vcmp.le.f32.partialorder %v120, 0.7853982
    %vm122 = vcmp.lt.s32.totalorder %v16, 0
    %v123 = vand.u32 %v16, 2139095040
    %v124 = vshrl.u32 %v123, 23
    %v125 = vsub.s32 %v124, 127
    %v126 = vand.u32 2147483647, %v16
    %v127 = vand.u32 %v126, 8388607
    %v128 = vor.u32 %v127, 8388608
    %v129 = vsub.s32 0, %v128
    %v130 = vadd.s32 %v125, 1
    %vm131 = vcmp.gt.s32.totalorder %v130, 0
    %v132 = vsel %vm131, %v130, 0
    %v133 = vshrl.u32 %v132, 5
    %v134 = vand.u32 %v132, 31
    %v135 = vsub.s32 32, %v134
    %v136 = vshrl.u32 683565275, %v135
    %v137 = vshll.u32 683565275, %v134
    %v138 = vshrl.u32 2475754826, %v135
    %v139 = vor.u32 %v137, %v138
    %v140 = vshll.u32 2475754826, %v134
    %v141 = vshrl.u32 2131351028, %v135
    %v142 = vor.u32 %v140, %v141
    %v143 = vshll.u32 2131351028, %v134
    %v144 = vshrl.u32 2102212464, %v135
    %v145 = vor.u32 %v143, %v144
    %v146 = vshll.u32 2102212464, %v134
    %v147 = vshrl.u32 920167782, %v135
    %v148 = vor.u32 %v146, %v147
    %v149 = vshll.u32 920167782, %v134
    %v150 = vshrl.u32 1326507024, %v135
    %v151 = vor.u32 %v149, %v150
    %vm152 = vcmp.lt.s32.totalorder %v133, 1
    %vm153 = vcmp.lt.s32.totalorder %v133, 2
    %vm154 = vcmp.lt.s32.totalorder %v133, 3
    %vm155 = vcmp.lt.s32.totalorder %v133, 4
    %v156 = vsel %vm152, %v136, %v139
    %v157 = vsel %vm155, %v145, 2102212464
    %v158 = vsel %vm154, %v142, %v157
    %v159 = vsel %vm153, %v156, %v158
    %v160 = vsel %vm152, %v139, %v142
    %v161 = vsel %vm155, %v148, 920167782
    %v162 = vsel %vm154, %v145, %v161
    %v163 = vsel %vm153, %v160, %v162
    %v164 = vsel %vm152, %v142, %v145
    %v165 = vsel %vm155, %v151, 1326507024
    %v166 = vsel %vm154, %v148, %v165
    %v167 = vsel %vm153, %v164, %v166
    %v168 = vshll.u32 %v128, 8
    %v169 = vmul.u32.u64.compose %v168, %v167
    %v170 = vextract.low.u32 %v169
    %v171 = vextract.high.u32 %v169
    %v172 = vmul.u32.u64.compose %v168, %v163
    %v173 = vextract.low.u32 %v172
    %v174 = vextract.high.u32 %v172
    %v175 = vmul.u32 %v168, %v159
    %v176 = vadd.s32 %v171, %v173
    %vm177 = vc.u32 %v171, %v173
    %v178 = vadd.s32 %v174, 1
    %v179 = vsel %vm177, %v178, %v174
    %v180 = vadd.s32 %v175, %v179
    %v181 = vadd.s32 %v180, 536870912
    %v182 = vshrl.u32 %v181, 30
    %v183 = vshll.u32 %v182, 30
    %v184 = vsub.s32 %v180, %v183
    %vm185 = vcmp.lt.s32.totalorder %v184, 0
    %v186 = vsub.s32 0, %v184
    %v187 = vsel %vm185, %v186, %v184
    %v188 = vclz %v187
    %v189 = vsub.s32 %v188, 2
    %vm190 = vcmp.gt.s32.totalorder 0, %v189
    %v191 = vsel %vm190, 0, %v189
    %v192 = vsub.s32 32, %v191
    %v193 = vshll.u32 %v184, %v191
    %v194 = vshrl.u32 %v176, %v192
    %v195 = vor.u32 %v193, %v194
    %v196 = vsub.s32 4294967266, %v191
    %v197 = vadd.s32 %v196, 127
    %v198 = vshll.u32 %v197, 23
    %v199 = vor.u32 4788187, %v198
    %v200 = vand.u32 2147483647, %v199
    %v202 = vcvt.s32.f32 %v195
    %v203 = vmul.f32 %v202, %v200
    %v204 = vxor.u32 %v203, 2147483648
    %v205 = vsel %vm122, %v204, %v203
    %v206 = vsub.s32 4, %v182
    %v207 = vsel %vm122, %v206, %v182
    %v208 = vsel %vm121, %v16, %v205
    %v209 = vsel %vm121, 0, %v207
    %v210 = vcosq.f32.pop %v208
    %v211 = vsinq.f32.pop %v208
    %vm212 = vweird.f32 %v16
    %v213 = vadd.s32 %v209, 3
    %v214 = vand.u32 %v213, 3
    %vm215 = vcmp.lt.s32.totalorder %v214, 2
    %vm216 = vcmp.eq.s32.totalorder %v214, 0
    %v217 = vxor.u32 %v211, 2147483648
    %v218 = vsel %vm216, %v210, %v217
    %vm219 = vcmp.eq.s32.totalorder %v214, 2
    %v220 = vxor.u32 %v210, 2147483648
    %v221 = vsel %vm219, %v220, %v211
    %v222 = vsel %vm215, %v218, %v221
    %v223 = vsel %vm212, nan, %v222
    %v224 = vlaneseq
    %v225 = vshrl.u32 %v224, 7
    %v226 = vand.u32 %v225, 4
    %vm227 = vcmp.ne.s32.totalorder %v226, 0
    %v228 = vsel %vm227, 1, 0
    %vm229 = vcmp.eq.s32.totalorder %v228, 1
    %v230 = vlaneseq
    %v231 = vshrl.u32 %v230, 7
    %v232 = vsub.s32 1, %v231
    %v233 = vrot.slane %v223, %v232
    %v234 = vlaneseq
    %v235 = vshrl.u32 %v234, 7
    %v236 = vsub.s32 1, %v235
    %v237 = vrot.slane %v119, %v236
    %v238 = vsel %vm229, %v233, %v237
    %v239 = vand.u32 %v225, 2
    %vm240 = vcmp.ne.s32.totalorder %v239, 0
    %v241 = vsel %vm240, 1, 0
    %vm242 = vcmp.eq.s32.totalorder %v241, 1
    %v243 = vlaneseq
    %v244 = vshrl.u32 %v243, 7
    %v245 = vsub.s32 2, %v244
    %v246 = vrot.slane %v223, %v245
    %v247 = vlaneseq
    %v248 = vshrl.u32 %v247, 7
    %v249 = vsub.s32 2, %v248
    %v250 = vrot.slane %v119, %v249
    %v251 = vsel %vm242, %v246, %v250
    %v252 = vmul.f32 %v238, %v251
    %v253 = vand.u32 %v225, 1
    %vm254 = vcmp.ne.s32.totalorder %v253, 0
    %v255 = vsel %vm254, 1, 0
    %vm256 = vcmp.eq.s32.totalorder %v255, 1
    %v257 = vlaneseq
    %v258 = vshrl.u32 %v257, 7
    %v259 = vsub.s32 3, %v258
    %v260 = vrot.slane %v223, %v259
    %v261 = vlaneseq
    %v262 = vshrl.u32 %v261, 7
    %v263 = vsub.s32 3, %v262
    %v264 = vrot.slane %v119, %v263
    %v265 = vsel %vm256, %v260, %v264
    %v266 = vmul.f32 %v252, %v265
    %v267 = vlaneseq
    %v268 = vshrl.u32 %v267, 7
    %v269 = vsub.s32 0, %v268
    %v270 = vrot.slane %v119, %v269
    %v271 = vmul.f32 %v270, %v266
    %v272 = vlaneseq
    %v273 = vshrl.u32 %v272, 7
    %v274 = vsub.s32 0, %v273
    %v275 = vrot.slane %v223, %v274
    %v276 = vmul.f32 %v275, %v266
    %v277 = vld [vmem:[%s1] sm:$0xff]
    %v278 = vld [vmem:[%s1 + $0x8] sm:$0xff]
    %v279 = vld [vmem:[%s1 + $0x10] sm:$0xff]
    %v280 = vld [vmem:[%s1 + $0x18] sm:$0xff]
    %vm281 = vcmask 130048
    %v283 = vsel %vm281, %v277, 0
    %v286 = vsel %vm281, %v278, 0
    %v289 = vsel %vm281, %v279, 0
    %v292 = vsel %vm281, %v280, 0
    %294 = vmatprep.subr.mxu0 0.0
    %295 = vmatpush1.msra.mxu0 0.0
    %296 = vmatprep.subr.mxu0 0.0
    %297 = vmatpush1.msra.mxu0 0.0
    %298 = vmatprep.subr.mxu0 0.0
    %299 = vmatpush1.msra.mxu0 0.0
    %300 = vmatprep.subr.mxu0 0.0
    %301 = vmatpush1.msra.mxu0 0.0
    %302 = vmatprep.subr.mxu0 0.0
    %303 = vmatpush1.msra.mxu0 0.0
    %304 = vmatprep.subr.mxu0 0.0
    %305 = vmatpush1.msra.mxu0 0.0
    %306 = vmatprep.subr.mxu0 0.0
    %307 = vmatpush1.msra.mxu0 0.0
    %308 = vmatprep.subr.mxu0 0.0
    %309 = vmatpush1.msra.mxu0 0.0
    %310 = vmatprep.subr.mxu0 0.0
    %311 = vmatpush1.msra.mxu0 0.0
    %312 = vmatprep.subr.mxu0 0.0
    %313 = vmatpush1.msra.mxu0 0.0
    %314 = vmatprep.subr.mxu0 0.0
    %315 = vmatpush1.msra.mxu0 0.0
    %316 = vmatprep.subr.mxu0 0.0
    %317 = vmatpush1.msra.mxu0 0.0
    %318 = vmatprep.subr.mxu0 0.0
    %319 = vmatpush1.msra.mxu0 0.0
    %320 = vmatprep.subr.mxu0 0.0
    %321 = vmatpush1.msra.mxu0 0.0
    %322 = vmatprep.subr.mxu0 0.0
    %v323 = vand.u32 %v276, 4294901760
    %324 = vmatpush1.msra.mxu0 %v323
    %325 = vmatprep.subr.mxu0 0.0
    %v326 = vand.u32 %v271, 4294901760
    %327 = vmatpush1.msra.mxu0 %v326
    %328 = vmatprep.subr.mxu0 0.0
    %329 = vmatpush2.msra.mxu0 0.0
    %330 = vmatprep.subr.mxu0 0.0
    %331 = vmatpush2.msra.mxu0 0.0
    %332 = vmatprep.subr.mxu0 0.0
    %333 = vmatpush2.msra.mxu0 0.0
    %334 = vmatprep.subr.mxu0 0.0
    %335 = vmatpush2.msra.mxu0 0.0
    %336 = vmatprep.subr.mxu0 0.0
    %337 = vmatpush2.msra.mxu0 0.0
    %338 = vmatprep.subr.mxu0 0.0
    %339 = vmatpush2.msra.mxu0 0.0
    %340 = vmatprep.subr.mxu0 0.0
    %341 = vmatpush2.msra.mxu0 0.0
    %342 = vmatprep.subr.mxu0 0.0
    %343 = vmatpush2.msra.mxu0 0.0
    %344 = vmatprep.subr.mxu0 0.0
    %345 = vmatpush2.msra.mxu0 0.0
    %346 = vmatprep.subr.mxu0 0.0
    %347 = vmatpush2.msra.mxu0 0.0
    %348 = vmatprep.subr.mxu0 0.0
    %349 = vmatpush2.msra.mxu0 0.0
    %350 = vmatprep.subr.mxu0 0.0
    %351 = vmatpush2.msra.mxu0 0.0
    %352 = vmatprep.subr.mxu0 0.0
    %353 = vmatpush2.msra.mxu0 0.0
    %354 = vmatprep.subr.mxu0 0.0
    %355 = vmatpush2.msra.mxu0 0.0
    %356 = vmatprep.subr.mxu0 0.0
    %357 = vmatpush2.msra.mxu0 0.0
    %358 = vmatprep.subr.mxu0 0.0
    %359 = vmatpush2.msra.mxu0 0.0
    %360 = vmatprep.mubr.f32.mxu0 0.0
    %v361 = vand.u32 %v283, 4294901760
    %v362 = vsub.f32 %v283, %v361
    %v363 = vand.u32 %v362, 4294901760
    %v364 = vsub.f32 %v362, %v363
    %v365 = vand.u32 %v364, 4294901760
    %366 = vmatmul.mubr.f32.gmra.mxu0 %v365
    %v367 = vpop.f32.mrf.mxu0
    %v368 = vadd.f32 0.0, %v367
    %v369 = vpop.f32.mrf.mxu0
    %370 = vmatprep.mubr.f32.mxu0 0.0
    %v371 = vand.u32 %v286, 4294901760
    %v372 = vsub.f32 %v286, %v371
    %v373 = vand.u32 %v372, 4294901760
    %v374 = vsub.f32 %v372, %v373
    %v375 = vand.u32 %v374, 4294901760
    %376 = vmatmul.mubr.f32.gmra.mxu0 %v375
    %v377 = vpop.f32.mrf.mxu0
    %v378 = vadd.f32 0.0, %v377
    %v379 = vpop.f32.mrf.mxu0
    %380 = vmatprep.mubr.f32.mxu0 0.0
    %v381 = vand.u32 %v289, 4294901760
    %v382 = vsub.f32 %v289, %v381
    %v383 = vand.u32 %v382, 4294901760
    %v384 = vsub.f32 %v382, %v383
    %v385 = vand.u32 %v384, 4294901760
    %386 = vmatmul.mubr.f32.gmra.mxu0 %v385
    %v387 = vpop.f32.mrf.mxu0
    %v388 = vadd.f32 0.0, %v387
    %v389 = vpop.f32.mrf.mxu0
    %390 = vmatprep.mubr.f32.mxu0 0.0
    %v391 = vand.u32 %v292, 4294901760
    %v392 = vsub.f32 %v292, %v391
    %v393 = vand.u32 %v392, 4294901760
    %v394 = vsub.f32 %v392, %v393
    %v395 = vand.u32 %v394, 4294901760
    %396 = vmatmul.mubr.f32.gmra.mxu0 %v395
    %v397 = vpop.f32.mrf.mxu0
    %v398 = vadd.f32 0.0, %v397
    %v399 = vpop.f32.mrf.mxu0
    %400 = vdwg.mxu0
    %401 = vmatprep.subr.mxu0 0.0
    %402 = vmatpush1.msra.mxu0 0.0
    %403 = vmatprep.subr.mxu0 0.0
    %404 = vmatpush1.msra.mxu0 0.0
    %405 = vmatprep.subr.mxu0 0.0
    %406 = vmatpush1.msra.mxu0 0.0
    %407 = vmatprep.subr.mxu0 0.0
    %408 = vmatpush1.msra.mxu0 0.0
    %409 = vmatprep.subr.mxu0 0.0
    %410 = vmatpush1.msra.mxu0 0.0
    %411 = vmatprep.subr.mxu0 0.0
    %412 = vmatpush1.msra.mxu0 0.0
    %413 = vmatprep.subr.mxu0 0.0
    %414 = vmatpush1.msra.mxu0 0.0
    %415 = vmatprep.subr.mxu0 0.0
    %416 = vmatpush1.msra.mxu0 0.0
    %417 = vmatprep.subr.mxu0 0.0
    %418 = vmatpush1.msra.mxu0 0.0
    %419 = vmatprep.subr.mxu0 0.0
    %420 = vmatpush1.msra.mxu0 0.0
    %421 = vmatprep.subr.mxu0 0.0
    %422 = vmatpush1.msra.mxu0 0.0
    %423 = vmatprep.subr.mxu0 0.0
    %424 = vmatpush1.msra.mxu0 0.0
    %425 = vmatprep.subr.mxu0 0.0
    %426 = vmatpush1.msra.mxu0 0.0
    %427 = vmatprep.subr.mxu0 0.0
    %428 = vmatpush1.msra.mxu0 0.0
    %429 = vmatprep.subr.mxu0 0.0
    %v430 = vand.u32 %v276, 4294901760
    %v431 = vsub.f32 %v276, %v430
    %v432 = vand.u32 %v431, 4294901760
    %v433 = vsub.f32 %v431, %v432
    %v434 = vand.u32 %v433, 4294901760
    %435 = vmatpush1.msra.mxu0 %v434
    %436 = vmatprep.subr.mxu0 0.0
    %v437 = vand.u32 %v271, 4294901760
    %v438 = vsub.f32 %v271, %v437
    %v439 = vand.u32 %v438, 4294901760
    %v440 = vsub.f32 %v438, %v439
    %v441 = vand.u32 %v440, 4294901760
    %442 = vmatpush1.msra.mxu0 %v441
    %443 = vmatprep.subr.mxu0 0.0
    %444 = vmatpush2.msra.mxu0 0.0
    %445 = vmatprep.subr.mxu0 0.0
    %446 = vmatpush2.msra.mxu0 0.0
    %447 = vmatprep.subr.mxu0 0.0
    %448 = vmatpush2.msra.mxu0 0.0
    %449 = vmatprep.subr.mxu0 0.0
    %450 = vmatpush2.msra.mxu0 0.0
    %451 = vmatprep.subr.mxu0 0.0
    %452 = vmatpush2.msra.mxu0 0.0
    %453 = vmatprep.subr.mxu0 0.0
    %454 = vmatpush2.msra.mxu0 0.0
    %455 = vmatprep.subr.mxu0 0.0
    %456 = vmatpush2.msra.mxu0 0.0
    %457 = vmatprep.subr.mxu0 0.0
    %458 = vmatpush2.msra.mxu0 0.0
    %459 = vmatprep.subr.mxu0 0.0
    %460 = vmatpush2.msra.mxu0 0.0
    %461 = vmatprep.subr.mxu0 0.0
    %462 = vmatpush2.msra.mxu0 0.0
    %463 = vmatprep.subr.mxu0 0.0
    %464 = vmatpush2.msra.mxu0 0.0
    %465 = vmatprep.subr.mxu0 0.0
    %466 = vmatpush2.msra.mxu0 0.0
    %467 = vmatprep.subr.mxu0 0.0
    %468 = vmatpush2.msra.mxu0 0.0
    %469 = vmatprep.subr.mxu0 0.0
    %470 = vmatpush2.msra.mxu0 0.0
    %471 = vmatprep.subr.mxu0 0.0
    %472 = vmatpush2.msra.mxu0 0.0
    %473 = vmatprep.subr.mxu0 0.0
    %474 = vmatpush2.msra.mxu0 0.0
    %475 = vmatprep.mubr.f32.mxu0 0.0
    %v476 = vand.u32 %v283, 4294901760
    %477 = vmatmul.mubr.f32.gmra.mxu0 %v476
    %v478 = vpop.f32.mrf.mxu0
    %v479 = vadd.f32 %v368, %v478
    %v480 = vpop.f32.mrf.mxu0
    %481 = vmatprep.mubr.f32.mxu0 0.0
    %v482 = vand.u32 %v286, 4294901760
    %483 = vmatmul.mubr.f32.gmra.mxu0 %v482
    %v484 = vpop.f32.mrf.mxu0
    %v485 = vadd.f32 %v378, %v484
    %v486 = vpop.f32.mrf.mxu0
    %487 = vmatprep.mubr.f32.mxu0 0.0
    %v488 = vand.u32 %v289, 4294901760
    %489 = vmatmul.mubr.f32.gmra.mxu0 %v488
    %v490 = vpop.f32.mrf.mxu0
    %v491 = vadd.f32 %v388, %v490
    %v492 = vpop.f32.mrf.mxu0
    %493 = vmatprep.mubr.f32.mxu0 0.0
    %v494 = vand.u32 %v292, 4294901760
    %495 = vmatmul.mubr.f32.gmra.mxu0 %v494
    %v496 = vpop.f32.mrf.mxu0
    %v497 = vadd.f32 %v398, %v496
    %v498 = vpop.f32.mrf.mxu0
    %499 = vdwg.mxu0
    %500 = vmatprep.subr.mxu0 0.0
    %501 = vmatpush1.msra.mxu0 0.0
    %502 = vmatprep.subr.mxu0 0.0
    %503 = vmatpush1.msra.mxu0 0.0
    %504 = vmatprep.subr.mxu0 0.0
    %505 = vmatpush1.msra.mxu0 0.0
    %506 = vmatprep.subr.mxu0 0.0
    %507 = vmatpush1.msra.mxu0 0.0
    %508 = vmatprep.subr.mxu0 0.0
    %509 = vmatpush1.msra.mxu0 0.0
    %510 = vmatprep.subr.mxu0 0.0
    %511 = vmatpush1.msra.mxu0 0.0
    %512 = vmatprep.subr.mxu0 0.0
    %513 = vmatpush1.msra.mxu0 0.0
    %514 = vmatprep.subr.mxu0 0.0
    %515 = vmatpush1.msra.mxu0 0.0
    %516 = vmatprep.subr.mxu0 0.0
    %517 = vmatpush1.msra.mxu0 0.0
    %518 = vmatprep.subr.mxu0 0.0
    %519 = vmatpush1.msra.mxu0 0.0
    %520 = vmatprep.subr.mxu0 0.0
    %521 = vmatpush1.msra.mxu0 0.0
    %522 = vmatprep.subr.mxu0 0.0
    %523 = vmatpush1.msra.mxu0 0.0
    %524 = vmatprep.subr.mxu0 0.0
    %525 = vmatpush1.msra.mxu0 0.0
    %526 = vmatprep.subr.mxu0 0.0
    %527 = vmatpush1.msra.mxu0 0.0
    %528 = vmatprep.subr.mxu0 0.0
    %v529 = vand.u32 %v276, 4294901760
    %v530 = vsub.f32 %v276, %v529
    %531 = vmatpush1.msra.mxu0 %v530
    %532 = vmatprep.subr.mxu0 0.0
    %v533 = vand.u32 %v271, 4294901760
    %v534 = vsub.f32 %v271, %v533
    %535 = vmatpush1.msra.mxu0 %v534
    %536 = vmatprep.subr.mxu0 0.0
    %537 = vmatpush2.msra.mxu0 0.0
    %538 = vmatprep.subr.mxu0 0.0
    %539 = vmatpush2.msra.mxu0 0.0
    %540 = vmatprep.subr.mxu0 0.0
    %541 = vmatpush2.msra.mxu0 0.0
    %542 = vmatprep.subr.mxu0 0.0
    %543 = vmatpush2.msra.mxu0 0.0
    %544 = vmatprep.subr.mxu0 0.0
    %545 = vmatpush2.msra.mxu0 0.0
    %546 = vmatprep.subr.mxu0 0.0
    %547 = vmatpush2.msra.mxu0 0.0
    %548 = vmatprep.subr.mxu0 0.0
    %549 = vmatpush2.msra.mxu0 0.0
    %550 = vmatprep.subr.mxu0 0.0
    %551 = vmatpush2.msra.mxu0 0.0
    %552 = vmatprep.subr.mxu0 0.0
    %553 = vmatpush2.msra.mxu0 0.0
    %554 = vmatprep.subr.mxu0 0.0
    %555 = vmatpush2.msra.mxu0 0.0
    %556 = vmatprep.subr.mxu0 0.0
    %557 = vmatpush2.msra.mxu0 0.0
    %558 = vmatprep.subr.mxu0 0.0
    %559 = vmatpush2.msra.mxu0 0.0
    %560 = vmatprep.subr.mxu0 0.0
    %561 = vmatpush2.msra.mxu0 0.0
    %562 = vmatprep.subr.mxu0 0.0
    %563 = vmatpush2.msra.mxu0 0.0
    %564 = vmatprep.subr.mxu0 0.0
    %565 = vmatpush2.msra.mxu0 0.0
    %566 = vmatprep.subr.mxu0 0.0
    %567 = vmatpush2.msra.mxu0 0.0
    %568 = vmatprep.mubr.f32.mxu0 0.0
    %v569 = vand.u32 %v283, 4294901760
    %v570 = vsub.f32 %v283, %v569
    %571 = vmatmul.mubr.f32.gmra.mxu0 %v570
    %v572 = vpop.f32.mrf.mxu0
    %v573 = vadd.f32 %v479, %v572
    %v574 = vpop.f32.mrf.mxu0
    %575 = vmatprep.mubr.f32.mxu0 0.0
    %v576 = vand.u32 %v286, 4294901760
    %v577 = vsub.f32 %v286, %v576
    %578 = vmatmul.mubr.f32.gmra.mxu0 %v577
    %v579 = vpop.f32.mrf.mxu0
    %v580 = vadd.f32 %v485, %v579
    %v581 = vpop.f32.mrf.mxu0
    %582 = vmatprep.mubr.f32.mxu0 0.0
    %v583 = vand.u32 %v289, 4294901760
    %v584 = vsub.f32 %v289, %v583
    %585 = vmatmul.mubr.f32.gmra.mxu0 %v584
    %v586 = vpop.f32.mrf.mxu0
    %v587 = vadd.f32 %v491, %v586
    %v588 = vpop.f32.mrf.mxu0
    %589 = vmatprep.mubr.f32.mxu0 0.0
    %v590 = vand.u32 %v292, 4294901760
    %v591 = vsub.f32 %v292, %v590
    %592 = vmatmul.mubr.f32.gmra.mxu0 %v591
    %v593 = vpop.f32.mrf.mxu0
    %v594 = vadd.f32 %v497, %v593
    %v595 = vpop.f32.mrf.mxu0
    %596 = vdwg.mxu0
    %597 = vmatprep.subr.mxu0 0.0
    %598 = vmatpush1.msra.mxu0 0.0
    %599 = vmatprep.subr.mxu0 0.0
    %600 = vmatpush1.msra.mxu0 0.0
    %601 = vmatprep.subr.mxu0 0.0
    %602 = vmatpush1.msra.mxu0 0.0
    %603 = vmatprep.subr.mxu0 0.0
    %604 = vmatpush1.msra.mxu0 0.0
    %605 = vmatprep.subr.mxu0 0.0
    %606 = vmatpush1.msra.mxu0 0.0
    %607 = vmatprep.subr.mxu0 0.0
    %608 = vmatpush1.msra.mxu0 0.0
    %609 = vmatprep.subr.mxu0 0.0
    %610 = vmatpush1.msra.mxu0 0.0
    %611 = vmatprep.subr.mxu0 0.0
    %612 = vmatpush1.msra.mxu0 0.0
    %613 = vmatprep.subr.mxu0 0.0
    %614 = vmatpush1.msra.mxu0 0.0
    %615 = vmatprep.subr.mxu0 0.0
    %616 = vmatpush1.msra.mxu0 0.0
    %617 = vmatprep.subr.mxu0 0.0
    %618 = vmatpush1.msra.mxu0 0.0
    %619 = vmatprep.subr.mxu0 0.0
    %620 = vmatpush1.msra.mxu0 0.0
    %621 = vmatprep.subr.mxu0 0.0
    %622 = vmatpush1.msra.mxu0 0.0
    %623 = vmatprep.subr.mxu0 0.0
    %624 = vmatpush1.msra.mxu0 0.0
    %625 = vmatprep.subr.mxu0 0.0
    %v626 = vand.u32 %v276, 4294901760
    %627 = vmatpush1.msra.mxu0 %v626
    %628 = vmatprep.subr.mxu0 0.0
    %v629 = vand.u32 %v271, 4294901760
    %630 = vmatpush1.msra.mxu0 %v629
    %631 = vmatprep.subr.mxu0 0.0
    %632 = vmatpush2.msra.mxu0 0.0
    %633 = vmatprep.subr.mxu0 0.0
    %634 = vmatpush2.msra.mxu0 0.0
    %635 = vmatprep.subr.mxu0 0.0
    %636 = vmatpush2.msra.mxu0 0.0
    %637 = vmatprep.subr.mxu0 0.0
    %638 = vmatpush2.msra.mxu0 0.0
    %639 = vmatprep.subr.mxu0 0.0
    %640 = vmatpush2.msra.mxu0 0.0
    %641 = vmatprep.subr.mxu0 0.0
    %642 = vmatpush2.msra.mxu0 0.0
    %643 = vmatprep.subr.mxu0 0.0
    %644 = vmatpush2.msra.mxu0 0.0
    %645 = vmatprep.subr.mxu0 0.0
    %646 = vmatpush2.msra.mxu0 0.0
    %647 = vmatprep.subr.mxu0 0.0
    %648 = vmatpush2.msra.mxu0 0.0
    %649 = vmatprep.subr.mxu0 0.0
    %650 = vmatpush2.msra.mxu0 0.0
    %651 = vmatprep.subr.mxu0 0.0
    %652 = vmatpush2.msra.mxu0 0.0
    %653 = vmatprep.subr.mxu0 0.0
    %654 = vmatpush2.msra.mxu0 0.0
    %655 = vmatprep.subr.mxu0 0.0
    %656 = vmatpush2.msra.mxu0 0.0
    %657 = vmatprep.subr.mxu0 0.0
    %658 = vmatpush2.msra.mxu0 0.0
    %659 = vmatprep.subr.mxu0 0.0
    %660 = vmatpush2.msra.mxu0 0.0
    %661 = vmatprep.subr.mxu0 0.0
    %662 = vmatpush2.msra.mxu0 0.0
    %663 = vmatprep.mubr.f32.mxu0 0.0
    %v664 = vand.u32 %v283, 4294901760
    %v665 = vsub.f32 %v283, %v664
    %v666 = vand.u32 %v665, 4294901760
    %667 = vmatmul.mubr.f32.gmra.mxu0 %v666
    %v668 = vpop.f32.mrf.mxu0
    %v669 = vadd.f32 %v573, %v668
    %v670 = vpop.f32.mrf.mxu0
    %671 = vmatprep.mubr.f32.mxu0 0.0
    %v672 = vand.u32 %v286, 4294901760
    %v673 = vsub.f32 %v286, %v672
    %v674 = vand.u32 %v673, 4294901760
    %675 = vmatmul.mubr.f32.gmra.mxu0 %v674
    %v676 = vpop.f32.mrf.mxu0
    %v677 = vadd.f32 %v580, %v676
    %v678 = vpop.f32.mrf.mxu0
    %679 = vmatprep.mubr.f32.mxu0 0.0
    %v680 = vand.u32 %v289, 4294901760
    %v681 = vsub.f32 %v289, %v680
    %v682 = vand.u32 %v681, 4294901760
    %683 = vmatmul.mubr.f32.gmra.mxu0 %v682
    %v684 = vpop.f32.mrf.mxu0
    %v685 = vadd.f32 %v587, %v684
    %v686 = vpop.f32.mrf.mxu0
    %687 = vmatprep.mubr.f32.mxu0 0.0
    %v688 = vand.u32 %v292, 4294901760
    %v689 = vsub.f32 %v292, %v688
    %v690 = vand.u32 %v689, 4294901760
    %691 = vmatmul.mubr.f32.gmra.mxu0 %v690
    %v692 = vpop.f32.mrf.mxu0
    %v693 = vadd.f32 %v594, %v692
    %v694 = vpop.f32.mrf.mxu0
    %695 = vdwg.mxu0
    %696 = vmatprep.subr.mxu0 0.0
    %697 = vmatpush1.msra.mxu0 0.0
    %698 = vmatprep.subr.mxu0 0.0
    %699 = vmatpush1.msra.mxu0 0.0
    %700 = vmatprep.subr.mxu0 0.0
    %701 = vmatpush1.msra.mxu0 0.0
    %702 = vmatprep.subr.mxu0 0.0
    %703 = vmatpush1.msra.mxu0 0.0
    %704 = vmatprep.subr.mxu0 0.0
    %705 = vmatpush1.msra.mxu0 0.0
    %706 = vmatprep.subr.mxu0 0.0
    %707 = vmatpush1.msra.mxu0 0.0
    %708 = vmatprep.subr.mxu0 0.0
    %709 = vmatpush1.msra.mxu0 0.0
    %710 = vmatprep.subr.mxu0 0.0
    %711 = vmatpush1.msra.mxu0 0.0
    %712 = vmatprep.subr.mxu0 0.0
    %713 = vmatpush1.msra.mxu0 0.0
    %714 = vmatprep.subr.mxu0 0.0
    %715 = vmatpush1.msra.mxu0 0.0
    %716 = vmatprep.subr.mxu0 0.0
    %717 = vmatpush1.msra.mxu0 0.0
    %718 = vmatprep.subr.mxu0 0.0
    %719 = vmatpush1.msra.mxu0 0.0
    %720 = vmatprep.subr.mxu0 0.0
    %721 = vmatpush1.msra.mxu0 0.0
    %722 = vmatprep.subr.mxu0 0.0
    %723 = vmatpush1.msra.mxu0 0.0
    %724 = vmatprep.subr.mxu0 0.0
    %v725 = vand.u32 %v276, 4294901760
    %v726 = vsub.f32 %v276, %v725
    %v727 = vand.u32 %v726, 4294901760
    %728 = vmatpush1.msra.mxu0 %v727
    %729 = vmatprep.subr.mxu0 0.0
    %v730 = vand.u32 %v271, 4294901760
    %v731 = vsub.f32 %v271, %v730
    %v732 = vand.u32 %v731, 4294901760
    %733 = vmatpush1.msra.mxu0 %v732
    %734 = vmatprep.subr.mxu0 0.0
    %735 = vmatpush2.msra.mxu0 0.0
    %736 = vmatprep.subr.mxu0 0.0
    %737 = vmatpush2.msra.mxu0 0.0
    %738 = vmatprep.subr.mxu0 0.0
    %739 = vmatpush2.msra.mxu0 0.0
    %740 = vmatprep.subr.mxu0 0.0
    %741 = vmatpush2.msra.mxu0 0.0
    %742 = vmatprep.subr.mxu0 0.0
    %743 = vmatpush2.msra.mxu0 0.0
    %744 = vmatprep.subr.mxu0 0.0
    %745 = vmatpush2.msra.mxu0 0.0
    %746 = vmatprep.subr.mxu0 0.0
    %747 = vmatpush2.msra.mxu0 0.0
    %748 = vmatprep.subr.mxu0 0.0
    %749 = vmatpush2.msra.mxu0 0.0
    %750 = vmatprep.subr.mxu0 0.0
    %751 = vmatpush2.msra.mxu0 0.0
    %752 = vmatprep.subr.mxu0 0.0
    %753 = vmatpush2.msra.mxu0 0.0
    %754 = vmatprep.subr.mxu0 0.0
    %755 = vmatpush2.msra.mxu0 0.0
    %756 = vmatprep.subr.mxu0 0.0
    %757 = vmatpush2.msra.mxu0 0.0
    %758 = vmatprep.subr.mxu0 0.0
    %759 = vmatpush2.msra.mxu0 0.0
    %760 = vmatprep.subr.mxu0 0.0
    %761 = vmatpush2.msra.mxu0 0.0
    %762 = vmatprep.subr.mxu0 0.0
    %763 = vmatpush2.msra.mxu0 0.0
    %764 = vmatprep.subr.mxu0 0.0
    %765 = vmatpush2.msra.mxu0 0.0
    %766 = vmatprep.mubr.f32.mxu0 0.0
    %v767 = vand.u32 %v283, 4294901760
    %768 = vmatmul.mubr.f32.gmra.mxu0 %v767
    %v769 = vpop.f32.mrf.mxu0
    %v770 = vadd.f32 %v669, %v769
    %v771 = vpop.f32.mrf.mxu0
    %772 = vmatprep.mubr.f32.mxu0 0.0
    %v773 = vand.u32 %v286, 4294901760
    %774 = vmatmul.mubr.f32.gmra.mxu0 %v773
    %v775 = vpop.f32.mrf.mxu0
    %v776 = vadd.f32 %v677, %v775
    %v777 = vpop.f32.mrf.mxu0
    %778 = vmatprep.mubr.f32.mxu0 0.0
    %v779 = vand.u32 %v289, 4294901760
    %780 = vmatmul.mubr.f32.gmra.mxu0 %v779
    %v781 = vpop.f32.mrf.mxu0
    %v782 = vadd.f32 %v685, %v781
    %v783 = vpop.f32.mrf.mxu0
    %784 = vmatprep.mubr.f32.mxu0 0.0
    %v785 = vand.u32 %v292, 4294901760
    %786 = vmatmul.mubr.f32.gmra.mxu0 %v785
    %v787 = vpop.f32.mrf.mxu0
    %v788 = vadd.f32 %v693, %v787
    %v789 = vpop.f32.mrf.mxu0
    %790 = vdwg.mxu0
    %791 = vmatprep.subr.mxu0 0.0
    %792 = vmatpush1.msra.mxu0 0.0
    %793 = vmatprep.subr.mxu0 0.0
    %794 = vmatpush1.msra.mxu0 0.0
    %795 = vmatprep.subr.mxu0 0.0
    %796 = vmatpush1.msra.mxu0 0.0
    %797 = vmatprep.subr.mxu0 0.0
    %798 = vmatpush1.msra.mxu0 0.0
    %799 = vmatprep.subr.mxu0 0.0
    %800 = vmatpush1.msra.mxu0 0.0
    %801 = vmatprep.subr.mxu0 0.0
    %802 = vmatpush1.msra.mxu0 0.0
    %803 = vmatprep.subr.mxu0 0.0
    %804 = vmatpush1.msra.mxu0 0.0
    %805 = vmatprep.subr.mxu0 0.0
    %806 = vmatpush1.msra.mxu0 0.0
    %807 = vmatprep.subr.mxu0 0.0
    %808 = vmatpush1.msra.mxu0 0.0
    %809 = vmatprep.subr.mxu0 0.0
    %810 = vmatpush1.msra.mxu0 0.0
    %811 = vmatprep.subr.mxu0 0.0
    %812 = vmatpush1.msra.mxu0 0.0
    %813 = vmatprep.subr.mxu0 0.0
    %814 = vmatpush1.msra.mxu0 0.0
    %815 = vmatprep.subr.mxu0 0.0
    %816 = vmatpush1.msra.mxu0 0.0
    %817 = vmatprep.subr.mxu0 0.0
    %818 = vmatpush1.msra.mxu0 0.0
    %819 = vmatprep.subr.mxu0 0.0
    %v820 = vand.u32 %v276, 4294901760
    %821 = vmatpush1.msra.mxu0 %v820
    %822 = vmatprep.subr.mxu0 0.0
    %v823 = vand.u32 %v271, 4294901760
    %824 = vmatpush1.msra.mxu0 %v823
    %825 = vmatprep.subr.mxu0 0.0
    %826 = vmatpush2.msra.mxu0 0.0
    %827 = vmatprep.subr.mxu0 0.0
    %828 = vmatpush2.msra.mxu0 0.0
    %829 = vmatprep.subr.mxu0 0.0
    %830 = vmatpush2.msra.mxu0 0.0
    %831 = vmatprep.subr.mxu0 0.0
    %832 = vmatpush2.msra.mxu0 0.0
    %833 = vmatprep.subr.mxu0 0.0
    %834 = vmatpush2.msra.mxu0 0.0
    %835 = vmatprep.subr.mxu0 0.0
    %836 = vmatpush2.msra.mxu0 0.0
    %837 = vmatprep.subr.mxu0 0.0
    %838 = vmatpush2.msra.mxu0 0.0
    %839 = vmatprep.subr.mxu0 0.0
    %840 = vmatpush2.msra.mxu0 0.0
    %841 = vmatprep.subr.mxu0 0.0
    %842 = vmatpush2.msra.mxu0 0.0
    %843 = vmatprep.subr.mxu0 0.0
    %844 = vmatpush2.msra.mxu0 0.0
    %845 = vmatprep.subr.mxu0 0.0
    %846 = vmatpush2.msra.mxu0 0.0
    %847 = vmatprep.subr.mxu0 0.0
    %848 = vmatpush2.msra.mxu0 0.0
    %849 = vmatprep.subr.mxu0 0.0
    %850 = vmatpush2.msra.mxu0 0.0
    %851 = vmatprep.subr.mxu0 0.0
    %852 = vmatpush2.msra.mxu0 0.0
    %853 = vmatprep.subr.mxu0 0.0
    %854 = vmatpush2.msra.mxu0 0.0
    %855 = vmatprep.subr.mxu0 0.0
    %856 = vmatpush2.msra.mxu0 0.0
    %857 = vmatprep.mubr.f32.mxu0 0.0
    %v858 = vand.u32 %v283, 4294901760
    %859 = vmatmul.mubr.f32.gmra.mxu0 %v858
    %v860 = vpop.f32.mrf.mxu0
    %v861 = vadd.f32 %v770, %v860
    %v862 = vpop.f32.mrf.mxu0
    %863 = vmatprep.mubr.f32.mxu0 0.0
    %v864 = vand.u32 %v286, 4294901760
    %865 = vmatmul.mubr.f32.gmra.mxu0 %v864
    %v866 = vpop.f32.mrf.mxu0
    %v867 = vadd.f32 %v776, %v866
    %v868 = vpop.f32.mrf.mxu0
    %869 = vmatprep.mubr.f32.mxu0 0.0
    %v870 = vand.u32 %v289, 4294901760
    %871 = vmatmul.mubr.f32.gmra.mxu0 %v870
    %v872 = vpop.f32.mrf.mxu0
    %v873 = vadd.f32 %v782, %v872
    %v874 = vpop.f32.mrf.mxu0
    %875 = vmatprep.mubr.f32.mxu0 0.0
    %v876 = vand.u32 %v292, 4294901760
    %877 = vmatmul.mubr.f32.gmra.mxu0 %v876
    %v878 = vpop.f32.mrf.mxu0
    %v879 = vadd.f32 %v788, %v878
    %v880 = vpop.f32.mrf.mxu0
    %881 = vdwg.mxu0
    %v882 = vmul.f32 %v861, %v861
    %v883 = vmul.f32 %v867, %v867
    %v884 = vmul.f32 %v873, %v873
    %v885 = vmul.f32 %v879, %v879
    %v886 = vld [vmem:[%s2] sm:$0xf]
    %vm887 = vcmask 261120
    %v889 = vsel %vm887, %v886, 0
    %891 = vmatprep.subr.mxu0 0.0
    %892 = vmatpush1.msra.mxu0 0.0
    %893 = vmatprep.subr.mxu0 0.0
    %894 = vmatpush1.msra.mxu0 0.0
    %895 = vmatprep.subr.mxu0 0.0
    %896 = vmatpush1.msra.mxu0 0.0
    %897 = vmatprep.subr.mxu0 0.0
    %898 = vmatpush1.msra.mxu0 0.0
    %899 = vmatprep.subr.mxu0 0.0
    %900 = vmatpush1.msra.mxu0 0.0
    %901 = vmatprep.subr.mxu0 0.0
    %902 = vmatpush1.msra.mxu0 0.0
    %903 = vmatprep.subr.mxu0 0.0
    %904 = vmatpush1.msra.mxu0 0.0
    %905 = vmatprep.subr.mxu0 0.0
    %906 = vmatpush1.msra.mxu0 0.0
    %907 = vmatprep.subr.mxu0 0.0
    %908 = vmatpush1.msra.mxu0 0.0
    %909 = vmatprep.subr.mxu0 0.0
    %910 = vmatpush1.msra.mxu0 0.0
    %911 = vmatprep.subr.mxu0 0.0
    %912 = vmatpush1.msra.mxu0 0.0
    %913 = vmatprep.subr.mxu0 0.0
    %914 = vmatpush1.msra.mxu0 0.0
    %915 = vmatprep.subr.mxu0 0.0
    %v916 = vand.u32 %v885, 4294901760
    %917 = vmatpush1.msra.mxu0 %v916
    %918 = vmatprep.subr.mxu0 0.0
    %v919 = vand.u32 %v884, 4294901760
    %920 = vmatpush1.msra.mxu0 %v919
    %921 = vmatprep.subr.mxu0 0.0
    %v922 = vand.u32 %v883, 4294901760
    %923 = vmatpush1.msra.mxu0 %v922
    %924 = vmatprep.subr.mxu0 0.0
    %v925 = vand.u32 %v882, 4294901760
    %926 = vmatpush1.msra.mxu0 %v925
    %927 = vmatprep.subr.mxu0 0.0
    %928 = vmatpush2.msra.mxu0 0.0
    %929 = vmatprep.subr.mxu0 0.0
    %930 = vmatpush2.msra.mxu0 0.0
    %931 = vmatprep.subr.mxu0 0.0
    %932 = vmatpush2.msra.mxu0 0.0
    %933 = vmatprep.subr.mxu0 0.0
    %934 = vmatpush2.msra.mxu0 0.0
    %935 = vmatprep.subr.mxu0 0.0
    %936 = vmatpush2.msra.mxu0 0.0
    %937 = vmatprep.subr.mxu0 0.0
    %938 = vmatpush2.msra.mxu0 0.0
    %939 = vmatprep.subr.mxu0 0.0
    %940 = vmatpush2.msra.mxu0 0.0
    %941 = vmatprep.subr.mxu0 0.0
    %942 = vmatpush2.msra.mxu0 0.0
    %943 = vmatprep.subr.mxu0 0.0
    %944 = vmatpush2.msra.mxu0 0.0
    %945 = vmatprep.subr.mxu0 0.0
    %946 = vmatpush2.msra.mxu0 0.0
    %947 = vmatprep.subr.mxu0 0.0
    %948 = vmatpush2.msra.mxu0 0.0
    %949 = vmatprep.subr.mxu0 0.0
    %950 = vmatpush2.msra.mxu0 0.0
    %951 = vmatprep.subr.mxu0 0.0
    %952 = vmatpush2.msra.mxu0 0.0
    %953 = vmatprep.subr.mxu0 0.0
    %954 = vmatpush2.msra.mxu0 0.0
    %955 = vmatprep.subr.mxu0 0.0
    %956 = vmatpush2.msra.mxu0 0.0
    %957 = vmatprep.subr.mxu0 0.0
    %958 = vmatpush2.msra.mxu0 0.0
    %959 = vmatprep.mubr.f32.mxu0 0.0
    %v960 = vand.u32 %v889, 4294901760
    %v961 = vsub.f32 %v889, %v960
    %v962 = vand.u32 %v961, 4294901760
    %v963 = vsub.f32 %v961, %v962
    %v964 = vand.u32 %v963, 4294901760
    %965 = vmatmul.mubr.f32.gmra.mxu0 %v964
    %v966 = vpop.f32.mrf.mxu0
    %v967 = vadd.f32 0.0, %v966
    %v968 = vpop.f32.mrf.mxu0
    %969 = vdwg.mxu0
    %970 = vmatprep.subr.mxu0 0.0
    %971 = vmatpush1.msra.mxu0 0.0
    %972 = vmatprep.subr.mxu0 0.0
    %973 = vmatpush1.msra.mxu0 0.0
    %974 = vmatprep.subr.mxu0 0.0
    %975 = vmatpush1.msra.mxu0 0.0
    %976 = vmatprep.subr.mxu0 0.0
    %977 = vmatpush1.msra.mxu0 0.0
    %978 = vmatprep.subr.mxu0 0.0
    %979 = vmatpush1.msra.mxu0 0.0
    %980 = vmatprep.subr.mxu0 0.0
    %981 = vmatpush1.msra.mxu0 0.0
    %982 = vmatprep.subr.mxu0 0.0
    %983 = vmatpush1.msra.mxu0 0.0
    %984 = vmatprep.subr.mxu0 0.0
    %985 = vmatpush1.msra.mxu0 0.0
    %986 = vmatprep.subr.mxu0 0.0
    %987 = vmatpush1.msra.mxu0 0.0
    %988 = vmatprep.subr.mxu0 0.0
    %989 = vmatpush1.msra.mxu0 0.0
    %990 = vmatprep.subr.mxu0 0.0
    %991 = vmatpush1.msra.mxu0 0.0
    %992 = vmatprep.subr.mxu0 0.0
    %993 = vmatpush1.msra.mxu0 0.0
    %994 = vmatprep.subr.mxu0 0.0
    %v995 = vand.u32 %v885, 4294901760
    %v996 = vsub.f32 %v885, %v995
    %v997 = vand.u32 %v996, 4294901760
    %v998 = vsub.f32 %v996, %v997
    %v999 = vand.u32 %v998, 4294901760
    %1000 = vmatpush1.msra.mxu0 %v999
    %1001 = vmatprep.subr.mxu0 0.0
    %v1002 = vand.u32 %v884, 4294901760
    %v1003 = vsub.f32 %v884, %v1002
    %v1004 = vand.u32 %v1003, 4294901760
    %v1005 = vsub.f32 %v1003, %v1004
    %v1006 = vand.u32 %v1005, 4294901760
    %1007 = vmatpush1.msra.mxu0 %v1006
    %1008 = vmatprep.subr.mxu0 0.0
    %v1009 = vand.u32 %v883, 4294901760
    %v1010 = vsub.f32 %v883, %v1009
    %v1011 = vand.u32 %v1010, 4294901760
    %v1012 = vsub.f32 %v1010, %v1011
    %v1013 = vand.u32 %v1012, 4294901760
    %1014 = vmatpush1.msra.mxu0 %v1013
    %1015 = vmatprep.subr.mxu0 0.0
    %v1016 = vand.u32 %v882, 4294901760
    %v1017 = vsub.f32 %v882, %v1016
    %v1018 = vand.u32 %v1017, 4294901760
    %v1019 = vsub.f32 %v1017, %v1018
    %v1020 = vand.u32 %v1019, 4294901760
    %1021 = vmatpush1.msra.mxu0 %v1020
    %1022 = vmatprep.subr.mxu0 0.0
    %1023 = vmatpush2.msra.mxu0 0.0
    %1024 = vmatprep.subr.mxu0 0.0
    %1025 = vmatpush2.msra.mxu0 0.0
    %1026 = vmatprep.subr.mxu0 0.0
    %1027 = vmatpush2.msra.mxu0 0.0
    %1028 = vmatprep.subr.mxu0 0.0
    %1029 = vmatpush2.msra.mxu0 0.0
    %1030 = vmatprep.subr.mxu0 0.0
    %1031 = vmatpush2.msra.mxu0 0.0
    %1032 = vmatprep.subr.mxu0 0.0
    %1033 = vmatpush2.msra.mxu0 0.0
    %1034 = vmatprep.subr.mxu0 0.0
    %1035 = vmatpush2.msra.mxu0 0.0
    %1036 = vmatprep.subr.mxu0 0.0
    %1037 = vmatpush2.msra.mxu0 0.0
    %1038 = vmatprep.subr.mxu0 0.0
    %1039 = vmatpush2.msra.mxu0 0.0
    %1040 = vmatprep.subr.mxu0 0.0
    %1041 = vmatpush2.msra.mxu0 0.0
    %1042 = vmatprep.subr.mxu0 0.0
    %1043 = vmatpush2.msra.mxu0 0.0
    %1044 = vmatprep.subr.mxu0 0.0
    %1045 = vmatpush2.msra.mxu0 0.0
    %1046 = vmatprep.subr.mxu0 0.0
    %1047 = vmatpush2.msra.mxu0 0.0
    %1048 = vmatprep.subr.mxu0 0.0
    %1049 = vmatpush2.msra.mxu0 0.0
    %1050 = vmatprep.subr.mxu0 0.0
    %1051 = vmatpush2.msra.mxu0 0.0
    %1052 = vmatprep.subr.mxu0 0.0
    %1053 = vmatpush2.msra.mxu0 0.0
    %1054 = vmatprep.mubr.f32.mxu0 0.0
    %v1055 = vand.u32 %v889, 4294901760
    %1056 = vmatmul.mubr.f32.gmra.mxu0 %v1055
    %v1057 = vpop.f32.mrf.mxu0
    %v1058 = vadd.f32 %v967, %v1057
    %v1059 = vpop.f32.mrf.mxu0
    %1060 = vdwg.mxu0
    %1061 = vmatprep.subr.mxu0 0.0
    %1062 = vmatpush1.msra.mxu0 0.0
    %1063 = vmatprep.subr.mxu0 0.0
    %1064 = vmatpush1.msra.mxu0 0.0
    %1065 = vmatprep.subr.mxu0 0.0
    %1066 = vmatpush1.msra.mxu0 0.0
    %1067 = vmatprep.subr.mxu0 0.0
    %1068 = vmatpush1.msra.mxu0 0.0
    %1069 = vmatprep.subr.mxu0 0.0
    %1070 = vmatpush1.msra.mxu0 0.0
    %1071 = vmatprep.subr.mxu0 0.0
    %1072 = vmatpush1.msra.mxu0 0.0
    %1073 = vmatprep.subr.mxu0 0.0
    %1074 = vmatpush1.msra.mxu0 0.0
    %1075 = vmatprep.subr.mxu0 0.0
    %1076 = vmatpush1.msra.mxu0 0.0
    %1077 = vmatprep.subr.mxu0 0.0
    %1078 = vmatpush1.msra.mxu0 0.0
    %1079 = vmatprep.subr.mxu0 0.0
    %1080 = vmatpush1.msra.mxu0 0.0
    %1081 = vmatprep.subr.mxu0 0.0
    %1082 = vmatpush1.msra.mxu0 0.0
    %1083 = vmatprep.subr.mxu0 0.0
    %1084 = vmatpush1.msra.mxu0 0.0
    %1085 = vmatprep.subr.mxu0 0.0
    %v1086 = vand.u32 %v885, 4294901760
    %v1087 = vsub.f32 %v885, %v1086
    %1088 = vmatpush1.msra.mxu0 %v1087
    %1089 = vmatprep.subr.mxu0 0.0
    %v1090 = vand.u32 %v884, 4294901760
    %v1091 = vsub.f32 %v884, %v1090
    %1092 = vmatpush1.msra.mxu0 %v1091
    %1093 = vmatprep.subr.mxu0 0.0
    %v1094 = vand.u32 %v883, 4294901760
    %v1095 = vsub.f32 %v883, %v1094
    %1096 = vmatpush1.msra.mxu0 %v1095
    %1097 = vmatprep.subr.mxu0 0.0
    %v1098 = vand.u32 %v882, 4294901760
    %v1099 = vsub.f32 %v882, %v1098
    %1100 = vmatpush1.msra.mxu0 %v1099
    %1101 = vmatprep.subr.mxu0 0.0
    %1102 = vmatpush2.msra.mxu0 0.0
    %1103 = vmatprep.subr.mxu0 0.0
    %1104 = vmatpush2.msra.mxu0 0.0
    %1105 = vmatprep.subr.mxu0 0.0
    %1106 = vmatpush2.msra.mxu0 0.0
    %1107 = vmatprep.subr.mxu0 0.0
    %1108 = vmatpush2.msra.mxu0 0.0
    %1109 = vmatprep.subr.mxu0 0.0
    %1110 = vmatpush2.msra.mxu0 0.0
    %1111 = vmatprep.subr.mxu0 0.0
    %1112 = vmatpush2.msra.mxu0 0.0
    %1113 = vmatprep.subr.mxu0 0.0
    %1114 = vmatpush2.msra.mxu0 0.0
    %1115 = vmatprep.subr.mxu0 0.0
    %1116 = vmatpush2.msra.mxu0 0.0
    %1117 = vmatprep.subr.mxu0 0.0
    %1118 = vmatpush2.msra.mxu0 0.0
    %1119 = vmatprep.subr.mxu0 0.0
    %1120 = vmatpush2.msra.mxu0 0.0
    %1121 = vmatprep.subr.mxu0 0.0
    %1122 = vmatpush2.msra.mxu0 0.0
    %1123 = vmatprep.subr.mxu0 0.0
    %1124 = vmatpush2.msra.mxu0 0.0
    %1125 = vmatprep.subr.mxu0 0.0
    %1126 = vmatpush2.msra.mxu0 0.0
    %1127 = vmatprep.subr.mxu0 0.0
    %1128 = vmatpush2.msra.mxu0 0.0
    %1129 = vmatprep.subr.mxu0 0.0
    %1130 = vmatpush2.msra.mxu0 0.0
    %1131 = vmatprep.subr.mxu0 0.0
    %1132 = vmatpush2.msra.mxu0 0.0
    %1133 = vmatprep.mubr.f32.mxu0 0.0
    %v1134 = vand.u32 %v889, 4294901760
    %v1135 = vsub.f32 %v889, %v1134
    %1136 = vmatmul.mubr.f32.gmra.mxu0 %v1135
    %v1137 = vpop.f32.mrf.mxu0
    %v1138 = vadd.f32 %v1058, %v1137
    %v1139 = vpop.f32.mrf.mxu0
    %1140 = vdwg.mxu0
    %1141 = vmatprep.subr.mxu0 0.0
    %1142 = vmatpush1.msra.mxu0 0.0
    %1143 = vmatprep.subr.mxu0 0.0
    %1144 = vmatpush1.msra.mxu0 0.0
    %1145 = vmatprep.subr.mxu0 0.0
    %1146 = vmatpush1.msra.mxu0 0.0
    %1147 = vmatprep.subr.mxu0 0.0
    %1148 = vmatpush1.msra.mxu0 0.0
    %1149 = vmatprep.subr.mxu0 0.0
    %1150 = vmatpush1.msra.mxu0 0.0
    %1151 = vmatprep.subr.mxu0 0.0
    %1152 = vmatpush1.msra.mxu0 0.0
    %1153 = vmatprep.subr.mxu0 0.0
    %1154 = vmatpush1.msra.mxu0 0.0
    %1155 = vmatprep.subr.mxu0 0.0
    %1156 = vmatpush1.msra.mxu0 0.0
    %1157 = vmatprep.subr.mxu0 0.0
    %1158 = vmatpush1.msra.mxu0 0.0
    %1159 = vmatprep.subr.mxu0 0.0
    %1160 = vmatpush1.msra.mxu0 0.0
    %1161 = vmatprep.subr.mxu0 0.0
    %1162 = vmatpush1.msra.mxu0 0.0
    %1163 = vmatprep.subr.mxu0 0.0
    %1164 = vmatpush1.msra.mxu0 0.0
    %1165 = vmatprep.subr.mxu0 0.0
    %v1166 = vand.u32 %v885, 4294901760
    %1167 = vmatpush1.msra.mxu0 %v1166
    %1168 = vmatprep.subr.mxu0 0.0
    %v1169 = vand.u32 %v884, 4294901760
    %1170 = vmatpush1.msra.mxu0 %v1169
    %1171 = vmatprep.subr.mxu0 0.0
    %v1172 = vand.u32 %v883, 4294901760
    %1173 = vmatpush1.msra.mxu0 %v1172
    %1174 = vmatprep.subr.mxu0 0.0
    %v1175 = vand.u32 %v882, 4294901760
    %1176 = vmatpush1.msra.mxu0 %v1175
    %1177 = vmatprep.subr.mxu0 0.0
    %1178 = vmatpush2.msra.mxu0 0.0
    %1179 = vmatprep.subr.mxu0 0.0
    %1180 = vmatpush2.msra.mxu0 0.0
    %1181 = vmatprep.subr.mxu0 0.0
    %1182 = vmatpush2.msra.mxu0 0.0
    %1183 = vmatprep.subr.mxu0 0.0
    %1184 = vmatpush2.msra.mxu0 0.0
    %1185 = vmatprep.subr.mxu0 0.0
    %1186 = vmatpush2.msra.mxu0 0.0
    %1187 = vmatprep.subr.mxu0 0.0
    %1188 = vmatpush2.msra.mxu0 0.0
    %1189 = vmatprep.subr.mxu0 0.0
    %1190 = vmatpush2.msra.mxu0 0.0
    %1191 = vmatprep.subr.mxu0 0.0
    %1192 = vmatpush2.msra.mxu0 0.0
    %1193 = vmatprep.subr.mxu0 0.0
    %1194 = vmatpush2.msra.mxu0 0.0
    %1195 = vmatprep.subr.mxu0 0.0
    %1196 = vmatpush2.msra.mxu0 0.0
    %1197 = vmatprep.subr.mxu0 0.0
    %1198 = vmatpush2.msra.mxu0 0.0
    %1199 = vmatprep.subr.mxu0 0.0
    %1200 = vmatpush2.msra.mxu0 0.0
    %1201 = vmatprep.subr.mxu0 0.0
    %1202 = vmatpush2.msra.mxu0 0.0
    %1203 = vmatprep.subr.mxu0 0.0
    %1204 = vmatpush2.msra.mxu0 0.0
    %1205 = vmatprep.subr.mxu0 0.0
    %1206 = vmatpush2.msra.mxu0 0.0
    %1207 = vmatprep.subr.mxu0 0.0
    %1208 = vmatpush2.msra.mxu0 0.0
    %1209 = vmatprep.mubr.f32.mxu0 0.0
    %v1210 = vand.u32 %v889, 4294901760
    %v1211 = vsub.f32 %v889, %v1210
    %v1212 = vand.u32 %v1211, 4294901760
    %1213 = vmatmul.mubr.f32.gmra.mxu0 %v1212
    %v1214 = vpop.f32.mrf.mxu0
    %v1215 = vadd.f32 %v1138, %v1214
    %v1216 = vpop.f32.mrf.mxu0
    %1217 = vdwg.mxu0
    %1218 = vmatprep.subr.mxu0 0.0
    %1219 = vmatpush1.msra.mxu0 0.0
    %1220 = vmatprep.subr.mxu0 0.0
    %1221 = vmatpush1.msra.mxu0 0.0
    %1222 = vmatprep.subr.mxu0 0.0
    %1223 = vmatpush1.msra.mxu0 0.0
    %1224 = vmatprep.subr.mxu0 0.0
    %1225 = vmatpush1.msra.mxu0 0.0
    %1226 = vmatprep.subr.mxu0 0.0
    %1227 = vmatpush1.msra.mxu0 0.0
    %1228 = vmatprep.subr.mxu0 0.0
    %1229 = vmatpush1.msra.mxu0 0.0
    %1230 = vmatprep.subr.mxu0 0.0
    %1231 = vmatpush1.msra.mxu0 0.0
    %1232 = vmatprep.subr.mxu0 0.0
    %1233 = vmatpush1.msra.mxu0 0.0
    %1234 = vmatprep.subr.mxu0 0.0
    %1235 = vmatpush1.msra.mxu0 0.0
    %1236 = vmatprep.subr.mxu0 0.0
    %1237 = vmatpush1.msra.mxu0 0.0
    %1238 = vmatprep.subr.mxu0 0.0
    %1239 = vmatpush1.msra.mxu0 0.0
    %1240 = vmatprep.subr.mxu0 0.0
    %1241 = vmatpush1.msra.mxu0 0.0
    %1242 = vmatprep.subr.mxu0 0.0
    %v1243 = vand.u32 %v885, 4294901760
    %v1244 = vsub.f32 %v885, %v1243
    %v1245 = vand.u32 %v1244, 4294901760
    %1246 = vmatpush1.msra.mxu0 %v1245
    %1247 = vmatprep.subr.mxu0 0.0
    %v1248 = vand.u32 %v884, 4294901760
    %v1249 = vsub.f32 %v884, %v1248
    %v1250 = vand.u32 %v1249, 4294901760
    %1251 = vmatpush1.msra.mxu0 %v1250
    %1252 = vmatprep.subr.mxu0 0.0
    %v1253 = vand.u32 %v883, 4294901760
    %v1254 = vsub.f32 %v883, %v1253
    %v1255 = vand.u32 %v1254, 4294901760
    %1256 = vmatpush1.msra.mxu0 %v1255
    %1257 = vmatprep.subr.mxu0 0.0
    %v1258 = vand.u32 %v882, 4294901760
    %v1259 = vsub.f32 %v882, %v1258
    %v1260 = vand.u32 %v1259, 4294901760
    %1261 = vmatpush1.msra.mxu0 %v1260
    %1262 = vmatprep.subr.mxu0 0.0
    %1263 = vmatpush2.msra.mxu0 0.0
    %1264 = vmatprep.subr.mxu0 0.0
    %1265 = vmatpush2.msra.mxu0 0.0
    %1266 = vmatprep.subr.mxu0 0.0
    %1267 = vmatpush2.msra.mxu0 0.0
    %1268 = vmatprep.subr.mxu0 0.0
    %1269 = vmatpush2.msra.mxu0 0.0
    %1270 = vmatprep.subr.mxu0 0.0
    %1271 = vmatpush2.msra.mxu0 0.0
    %1272 = vmatprep.subr.mxu0 0.0
    %1273 = vmatpush2.msra.mxu0 0.0
    %1274 = vmatprep.subr.mxu0 0.0
    %1275 = vmatpush2.msra.mxu0 0.0
    %1276 = vmatprep.subr.mxu0 0.0
    %1277 = vmatpush2.msra.mxu0 0.0
    %1278 = vmatprep.subr.mxu0 0.0
    %1279 = vmatpush2.msra.mxu0 0.0
    %1280 = vmatprep.subr.mxu0 0.0
    %1281 = vmatpush2.msra.mxu0 0.0
    %1282 = vmatprep.subr.mxu0 0.0
    %1283 = vmatpush2.msra.mxu0 0.0
    %1284 = vmatprep.subr.mxu0 0.0
    %1285 = vmatpush2.msra.mxu0 0.0
    %1286 = vmatprep.subr.mxu0 0.0
    %1287 = vmatpush2.msra.mxu0 0.0
    %1288 = vmatprep.subr.mxu0 0.0
    %1289 = vmatpush2.msra.mxu0 0.0
    %1290 = vmatprep.subr.mxu0 0.0
    %1291 = vmatpush2.msra.mxu0 0.0
    %1292 = vmatprep.subr.mxu0 0.0
    %1293 = vmatpush2.msra.mxu0 0.0
    %1294 = vmatprep.mubr.f32.mxu0 0.0
    %v1295 = vand.u32 %v889, 4294901760
    %1296 = vmatmul.mubr.f32.gmra.mxu0 %v1295
    %v1297 = vpop.f32.mrf.mxu0
    %v1298 = vadd.f32 %v1215, %v1297
    %v1299 = vpop.f32.mrf.mxu0
    %1300 = vdwg.mxu0
    %1301 = vmatprep.subr.mxu0 0.0
    %1302 = vmatpush1.msra.mxu0 0.0
    %1303 = vmatprep.subr.mxu0 0.0
    %1304 = vmatpush1.msra.mxu0 0.0
    %1305 = vmatprep.subr.mxu0 0.0
    %1306 = vmatpush1.msra.mxu0 0.0
    %1307 = vmatprep.subr.mxu0 0.0
    %1308 = vmatpush1.msra.mxu0 0.0
    %1309 = vmatprep.subr.mxu0 0.0
    %1310 = vmatpush1.msra.mxu0 0.0
    %1311 = vmatprep.subr.mxu0 0.0
    %1312 = vmatpush1.msra.mxu0 0.0
    %1313 = vmatprep.subr.mxu0 0.0
    %1314 = vmatpush1.msra.mxu0 0.0
    %1315 = vmatprep.subr.mxu0 0.0
    %1316 = vmatpush1.msra.mxu0 0.0
    %1317 = vmatprep.subr.mxu0 0.0
    %1318 = vmatpush1.msra.mxu0 0.0
    %1319 = vmatprep.subr.mxu0 0.0
    %1320 = vmatpush1.msra.mxu0 0.0
    %1321 = vmatprep.subr.mxu0 0.0
    %1322 = vmatpush1.msra.mxu0 0.0
    %1323 = vmatprep.subr.mxu0 0.0
    %1324 = vmatpush1.msra.mxu0 0.0
    %1325 = vmatprep.subr.mxu0 0.0
    %v1326 = vand.u32 %v885, 4294901760
    %1327 = vmatpush1.msra.mxu0 %v1326
    %1328 = vmatprep.subr.mxu0 0.0
    %v1329 = vand.u32 %v884, 4294901760
    %1330 = vmatpush1.msra.mxu0 %v1329
    %1331 = vmatprep.subr.mxu0 0.0
    %v1332 = vand.u32 %v883, 4294901760
    %1333 = vmatpush1.msra.mxu0 %v1332
    %1334 = vmatprep.subr.mxu0 0.0
    %v1335 = vand.u32 %v882, 4294901760
    %1336 = vmatpush1.msra.mxu0 %v1335
    %1337 = vmatprep.subr.mxu0 0.0
    %1338 = vmatpush2.msra.mxu0 0.0
    %1339 = vmatprep.subr.mxu0 0.0
    %1340 = vmatpush2.msra.mxu0 0.0
    %1341 = vmatprep.subr.mxu0 0.0
    %1342 = vmatpush2.msra.mxu0 0.0
    %1343 = vmatprep.subr.mxu0 0.0
    %1344 = vmatpush2.msra.mxu0 0.0
    %1345 = vmatprep.subr.mxu0 0.0
    %1346 = vmatpush2.msra.mxu0 0.0
    %1347 = vmatprep.subr.mxu0 0.0
    %1348 = vmatpush2.msra.mxu0 0.0
    %1349 = vmatprep.subr.mxu0 0.0
    %1350 = vmatpush2.msra.mxu0 0.0
    %1351 = vmatprep.subr.mxu0 0.0
    %1352 = vmatpush2.msra.mxu0 0.0
    %1353 = vmatprep.subr.mxu0 0.0
    %1354 = vmatpush2.msra.mxu0 0.0
    %1355 = vmatprep.subr.mxu0 0.0
    %1356 = vmatpush2.msra.mxu0 0.0
    %1357 = vmatprep.subr.mxu0 0.0
    %1358 = vmatpush2.msra.mxu0 0.0
    %1359 = vmatprep.subr.mxu0 0.0
    %1360 = vmatpush2.msra.mxu0 0.0
    %1361 = vmatprep.subr.mxu0 0.0
    %1362 = vmatpush2.msra.mxu0 0.0
    %1363 = vmatprep.subr.mxu0 0.0
    %1364 = vmatpush2.msra.mxu0 0.0
    %1365 = vmatprep.subr.mxu0 0.0
    %1366 = vmatpush2.msra.mxu0 0.0
    %1367 = vmatprep.subr.mxu0 0.0
    %1368 = vmatpush2.msra.mxu0 0.0
    %1369 = vmatprep.mubr.f32.mxu0 0.0
    %v1370 = vand.u32 %v889, 4294901760
    %1371 = vmatmul.mubr.f32.gmra.mxu0 %v1370
    %v1372 = vpop.f32.mrf.mxu0
    %v1373 = vadd.f32 %v1298, %v1372
    %v1374 = vpop.f32.mrf.mxu0
    %1375 = vdwg.mxu0
    %1376 = vst [vmem:[#allocation2] sm:$0xf] %v1373
    // Predicated region
    $region14: #{generator_quantum_circuit_forward_t.1} parent=1 // pred_check
      _
    $region15: #{generator_quantum_circuit_forward_t.1} parent=1 // pred_check_branch
      %1378 = sbr.rel (0) target = $region17
    $region16: #{generator_quantum_circuit_forward_t.1} parent=1 // pred_region
      %s1380 = ssub.s32 64, 64
      %1381 = vsyncadd [#allocation3], %s1380
      %s1383 = sshll.u32 [#allocation2], 4
      %s1384 = int_to_ptr.vmem [resolvable:$true] %s1383
      %1386 = dma.vmem_to_hbm [thread:$0]  %s1384, 64, %s3, [#allocation3]
    $region17: #{generator_quantum_circuit_forward_t.1} parent=1 // pred_fallthru
      _
    // Predicated region
    $region18: #{generator_quantum_circuit_forward_t.1} parent=1 // pred_check
      _
    $region19: #{generator_quantum_circuit_forward_t.1} parent=1 // pred_check_branch
      %1388 = sbr.rel (0) target = $region21
    $region20: #{generator_quantum_circuit_forward_t.1} parent=1 // pred_region
      %1389 = dma.done [#allocation3], 64
    $region21: #{generator_quantum_circuit_forward_t.1} parent=1 // pred_fallthru
      _
    %1390 = vsyncpa [#allocation3], 1

</llo_original>
